<compile_context>
chip_gen: v6e
topology: v6e:2x2x1
jax: 0.10.0
libtpu: 0.0.40
codegen_flags: <defaults>
</compile_context>

<pallas_src>
import functools

import numpy as np
import jax
import jax.numpy as jnp
from jax.experimental import pallas as pl
from jax.experimental.pallas import tpu as pltpu


def _round_up(x, m):
    return ((x + m - 1) // m) * m


def _xe_loss_kernel(x_ref, w_ref, b_ref, tgt_ref, mask_ref, out_ref,
                    m_sc, l_sc, t_sc):
    """Streaming fused decoder head + masked-NLL partial for one row tile.

    Grid: (N tiles [parallel], V blocks [arbitrary, innermost]).
      x_ref:    (TN, D)   bf16 hidden-state tile        (varies with i)
      w_ref:    (D,  TV)  bf16 projection block         (varies with j)
      b_ref:    (1,  TV)  f32 bias block                (varies with j)
      tgt_ref:  (TN, 1)   int32 targets                 (varies with i)
      mask_ref: (TN, 1)   f32 mask                      (varies with i)
      out_ref:  (8, 128)  f32 per-N-tile partial numerator, written ONCE at
                          the last V block (tile total at [0, 0], zeros else)
      m_sc/l_sc/t_sc: (TN, 1) f32 running max / sum-exp / target-logit.
    """
    j = pl.program_id(1)
    tv = w_ref.shape[1]

    @pl.when(j == 0)
    def _():
        m_sc[...] = jnp.full_like(m_sc, -jnp.inf)
        l_sc[...] = jnp.zeros_like(l_sc)
        t_sc[...] = jnp.zeros_like(t_sc)

    # (TN, TV) logits block on the MXU (bf16 operands, f32 accumulation) + bias
    logits = jnp.dot(x_ref[...], w_ref[...],
                     preferred_element_type=jnp.float32) + b_ref[...]

    # online (streaming) logsumexp update
    m_prev = m_sc[...]
    m_new = jnp.maximum(m_prev, jnp.max(logits, axis=-1, keepdims=True))
    alpha = jnp.exp(m_prev - m_new)
    l_sc[...] = alpha * l_sc[...] + jnp.sum(jnp.exp(logits - m_new),
                                            axis=-1, keepdims=True)
    m_sc[...] = m_new

    # target logit for columns [j*tv, (j+1)*tv): one-hot select + lane reduce
    # (no vgather on TPU; only the block holding the target contributes)
    col = jax.lax.broadcasted_iota(jnp.int32, logits.shape, 1) + j * tv
    t_sc[...] += jnp.sum(jnp.where(col == tgt_ref[...], logits, 0.0),
                         axis=-1, keepdims=True)

    @pl.when(j == pl.num_programs(1) - 1)
    def _():
        lse = m_sc[...] + jnp.log(l_sc[...])
        nll = mask_ref[...] * (lse - t_sc[...])           # (TN, 1)
        total = jnp.sum(nll)                              # scalar per N tile
        sub = jax.lax.broadcasted_iota(jnp.int32, out_ref.shape, 0)
        lane = jax.lax.broadcasted_iota(jnp.int32, out_ref.shape, 1)
        # single dense (8, 128) store; host-side jnp.sum recovers the exact value
        out_ref[...] = jnp.where((sub == 0) & (lane == 0), total, 0.0)


@functools.partial(jax.jit,
                   static_argnames=("tile_n", "tile_v", "vmem_limit_bytes"))
def xe_language_model_loss(x, w, b, target, mask, *, tile_n=256, tile_v=2048,
                           vmem_limit_bytes=None):
    """loss = sum_t(-logprob[t, target[t]] * mask[t]) / sum_t(mask[t])."""
    N, D = x.shape
    V = w.shape[1]

    # bf16 MXU operands; cast BEFORE padding so the pad copy moves half the bytes
    xb = x.astype(jnp.bfloat16)
    wb = w.astype(jnp.bfloat16)
    bb = b.reshape(1, V).astype(jnp.float32)
    tgt = target.astype(jnp.int32)
    msk = mask.astype(jnp.float32)

    # --- N (row) tiling: multiples of 16 keep bf16 in its native packed layout;
    # padded rows are neutralized by mask = 0.
    tn = min(tile_n, _round_up(N, 16))
    n_pad = _round_up(N, tn)
    if n_pad != N:
        pad = n_pad - N
        xb = jnp.pad(xb, ((0, pad), (0, 0)))
        tgt = jnp.pad(tgt, ((0, pad), (0, 0)))
        msk = jnp.pad(msk, ((0, pad), (0, 0)))
    num_tiles = n_pad // tn

    # --- V (vocab) tiling: lane-aligned blocks; pad vocab with a -1e30 bias so
    # padded columns never win the max, vanish in exp(), and can't be a target.
    # NOTE: size tile_v per generation (v7x ~half of v5e/v6e VMEM budget).
    tv = min(tile_v, _round_up(V, 128))
    v_pad = _round_up(V, tv)
    if v_pad != V:
        wb = jnp.pad(wb, ((0, 0), (0, v_pad - V)))
        bb = jnp.pad(bb, ((0, 0), (0, v_pad - V)), constant_values=-1e30)
    num_v_blocks = v_pad // tv

    cost = pl.CostEstimate(
        flops=2 * n_pad * D * v_pad,
        transcendentals=n_pad * v_pad,
        bytes_accessed=(n_pad * D * 2                 # x (bf16), read once
                        + num_tiles * D * v_pad * 2   # w (bf16), once per N tile
                        + v_pad * 4                   # bias
                        + 2 * n_pad * 4               # target + mask
                        + num_tiles * 8 * 128 * 4))   # partial outputs

    num_parts = pl.pallas_call(
        _xe_loss_kernel,
        out_shape=jax.ShapeDtypeStruct((num_tiles * 8, 128), jnp.float32),
        grid_spec=pltpu.PrefetchScalarGridSpec(
            num_scalar_prefetch=0,
            grid=(num_tiles, num_v_blocks),
            in_specs=[
                pl.BlockSpec((tn, D), lambda i, j: (i, 0)),
                pl.BlockSpec((D, tv), lambda i, j: (0, j)),
                pl.BlockSpec((1, tv), lambda i, j: (0, j)),
                pl.BlockSpec((tn, 1), lambda i, j: (i, 0)),
                pl.BlockSpec((tn, 1), lambda i, j: (i, 0)),
            ],
            out_specs=pl.BlockSpec((8, 128), lambda i, j: (i, 0)),
            scratch_shapes=[pltpu.VMEM((tn, 1), jnp.float32),   # running max
                            pltpu.VMEM((tn, 1), jnp.float32),   # running sum-exp
                            pltpu.VMEM((tn, 1), jnp.float32)],  # target logit
        ),
        compiler_params=pltpu.CompilerParams(
            # independent N tiles -> shard across TensorCores; V blocks carry
            # the streaming-LSE accumulators -> must stay "arbitrary"/innermost
            dimension_semantics=("parallel", "arbitrary"),
            vmem_limit_bytes=vmem_limit_bytes,
        ),
        cost_estimate=cost,
    )(xb, wb, bb, tgt, msk)

    num = jnp.sum(num_parts)
    den = jnp.sum(msk)
    safe_den = jnp.where(den > 0, den, 1.0)   # guard: all-masked batch -> 0, not NaN
    return jnp.where(den > 0, num / safe_den, 0.0)


class LossWrapper:
    """JAX/Pallas port of captioning LossWrapper (cross-entropy / non-SCST path).

    Note: the original forward always uses `self.xe_crit` (LanguageModelCriterion)
    on the XE path, so `label_smoothing` never enters the computed loss; it is
    stored here only for interface parity.
    """

    def __init__(self, opt, vocab_size, d_model, key):
        self.opt = opt
        self.train_sample_n = opt.get("train_sample_n", 5)
        self.label_smoothing = opt.get("label_smoothing", 0.0)
        if opt.get("use_ghmloss", False):
            # TODO(synk): GHMC loss (gradient-harmonizing) has no Pallas port.
            raise NotImplementedError("use_ghmloss not supported in this port")
        k1, k2 = jax.random.split(key, 2)
        # deterministic parameter init (shapes implied by the decoder head)
        self.embed = 0.02 * jax.random.normal(k1, (vocab_size, d_model), jnp.float32)
        self.w_out = 0.02 * jax.random.normal(k2, (d_model, vocab_size), jnp.float32)
        self.b_out = jnp.zeros((vocab_size,), jnp.float32)

    def _model(self, obj_f, grid_f, tag_f, labels_in):
        # stand-in decoder hidden states (glue; heavy math is in the kernel)
        ctx = obj_f.mean(1) + grid_f.mean(1) + tag_f.mean(1)        # (B, D)
        emb = jnp.take(self.embed, labels_in, axis=0)               # (B, L, D)
        return emb + ctx[:, None, :]                                # (B, L, D)

    def __call__(self, obj_f, grid_f, tag_f, labels, masks, tags=None,
                 gts=None, gt_indices=None, SCST_flag=False):
        out = {}
        if SCST_flag:
            # TODO(synk): SCST branch needs autoregressive sampling + CIDEr
            # rewards (get_scores / get_self_cider_scores, numpy side); no
            # Pallas equivalent — only the XE path is implemented.
            raise NotImplementedError("SCST path not supported in this port")

        labels_in = labels[..., :-1]
        target = labels[..., 1:]
        mask = masks[..., 1:]

        x = self._model(obj_f, grid_f, tag_f, labels_in)            # (B, L, D)
        B, L, D = x.shape
        x2 = x.reshape(B * L, D)                                    # kernel casts to bf16
        tgt2 = target.reshape(B * L, 1).astype(jnp.int32)
        msk2 = mask.reshape(B * L, 1).astype(jnp.float32)

        loss = xe_language_model_loss(x2, self.w_out, self.b_out, tgt2, msk2)
        out["loss"] = loss
        return out


if __name__ == "__main__":
    key = jax.random.PRNGKey(0)
    B, L1, D, V = 2, 9, 32, 128          # labels: (B, L1); decoder seq L = 8
    N_obj, N_grid, N_tag = 10, 16, 6
    ks = jax.random.split(key, 6)

    obj_f = jax.random.normal(ks[0], (B, N_obj, D), jnp.float32)
    grid_f = jax.random.normal(ks[1], (B, N_grid, D), jnp.float32)
    tag_f = jax.random.normal(ks[2], (B, N_tag, D), jnp.float32)
    labels = jax.random.randint(ks[3], (B, L1), 0, V, dtype=jnp.int32)
    lens = jnp.array([L1, L1 - 3])
    masks = (jnp.arange(L1)[None, :] < lens[:, None]).astype(jnp.float32)

    opt = {"label_smoothing": 0.0, "use_ghmloss": False,
           "train_sample_n": 5, "max_length": L1 - 1, "base_type": "average"}

    wrapper = LossWrapper(opt, vocab_size=V, d_model=D, key=ks[4])
    out = wrapper(obj_f, grid_f, tag_f, labels, masks, SCST_flag=False)
    loss = jax.block_until_ready(out["loss"])

    # pure-JAX reference of the same semantics (LanguageModelCriterion),
    # with the matmul precision aligned to the kernel (bf16 operands, f32 acc)
    x_hid = wrapper._model(obj_f, grid_f, tag_f, labels[..., :-1])
    xb = x_hid.astype(jnp.bfloat16).astype(jnp.float32)
    wb = wrapper.w_out.astype(jnp.bfloat16).astype(jnp.float32)
    logits_ref = jnp.dot(xb, wb, precision=jax.lax.Precision.HIGHEST) + wrapper.b_out
    lp = jax.nn.log_softmax(logits_ref, axis=-1)
    gathered = jnp.take_along_axis(lp, labels[..., 1:][..., None], axis=-1)[..., 0]
    ref = jnp.sum(-gathered * masks[..., 1:]) / jnp.sum(masks[..., 1:])
    np.testing.assert_allclose(np.asarray(loss), np.asarray(ref),
                               rtol=1e-4, atol=1e-4)
    print("KERNEL_OK")
</pallas_src>

<mosaic_0001>
module attributes {stable_mosaic.version = 11 : i64} {
  func.func @_xe_loss_kernel(%arg0: i32, %arg1: i32, %arg2: memref<16x32xbf16, #tpu.memory_space<vmem>>, %arg3: memref<32x128xbf16, #tpu.memory_space<vmem>>, %arg4: memref<1x128xf32, #tpu.memory_space<vmem>>, %arg5: memref<16x1xi32, #tpu.memory_space<vmem>>, %arg6: memref<16x1xf32, #tpu.memory_space<vmem>>, %arg7: memref<8x128xf32, #tpu.memory_space<vmem>>, %arg8: memref<16x1xf32, #tpu.memory_space<vmem>>, %arg9: memref<16x1xf32, #tpu.memory_space<vmem>>, %arg10: memref<16x1xf32, #tpu.memory_space<vmem>>) attributes {dimension_semantics = [#tpu.dimension_semantics<parallel>, #tpu.dimension_semantics<arbitrary>], iteration_bounds = array<i64: 1, 1>, scalar_prefetch = 0 : i64, scratch_operands = 3 : i64, tpu.core_type = #tpu.core_type<tc>, window_params = [{transform_indices = @transform_0, window_bounds = array<i64: 16, 32>}, {transform_indices = @transform_1, window_bounds = array<i64: 32, 128>}, {transform_indices = @transform_2, window_bounds = array<i64: 1, 128>}, {transform_indices = @transform_3, window_bounds = array<i64: 16, 1>}, {transform_indices = @transform_4, window_bounds = array<i64: 16, 1>}, {transform_indices = @transform_5, window_bounds = array<i64: 8, 128>}]} {
    %c0_i32 = arith.constant 0 : i32
    %0 = arith.cmpi eq, %arg1, %c0_i32 : i32
    %1 = arith.extui %0 : i1 to i32
    %c0_i32_0 = arith.constant 0 : i32
    %2 = arith.cmpi ne, %1, %c0_i32_0 : i32
    scf.if %2 {
      %cst_26 = arith.constant 0xFF800000 : f32
      %42 = vector.broadcast %cst_26 : f32 to vector<16x1xf32>
      %c0_27 = arith.constant 0 : index
      %c0_28 = arith.constant 0 : index
      %43 = vector.load %arg8[%c0_27, %c0_28] : memref<16x1xf32, #tpu.memory_space<vmem>>, vector<16x1xf32>
      tpu.vector_store %arg8[%c0_27, %c0_28], %42 {strides = array<i32>} : memref<16x1xf32, #tpu.memory_space<vmem>>, vector<16x1xf32>,
      %cst_29 = arith.constant 0.000000e+00 : f32
      %44 = vector.broadcast %cst_29 : f32 to vector<16x1xf32>
      %c0_30 = arith.constant 0 : index
      %c0_31 = arith.constant 0 : index
      %45 = vector.load %arg9[%c0_30, %c0_31] : memref<16x1xf32, #tpu.memory_space<vmem>>, vector<16x1xf32>
      tpu.vector_store %arg9[%c0_30, %c0_31], %44 {strides = array<i32>} : memref<16x1xf32, #tpu.memory_space<vmem>>, vector<16x1xf32>,
      %cst_32 = arith.constant 0.000000e+00 : f32
      %46 = vector.broadcast %cst_32 : f32 to vector<16x1xf32>
      %c0_33 = arith.constant 0 : index
      %c0_34 = arith.constant 0 : index
      %47 = vector.load %arg10[%c0_33, %c0_34] : memref<16x1xf32, #tpu.memory_space<vmem>>, vector<16x1xf32>
      tpu.vector_store %arg10[%c0_33, %c0_34], %46 {strides = array<i32>} : memref<16x1xf32, #tpu.memory_space<vmem>>, vector<16x1xf32>,
    } else {
    }
    %c0 = arith.constant 0 : index
    %c0_1 = arith.constant 0 : index
    %3 = vector.load %arg2[%c0, %c0_1] : memref<16x32xbf16, #tpu.memory_space<vmem>>, vector<16x32xbf16>
    %c0_2 = arith.constant 0 : index
    %c0_3 = arith.constant 0 : index
    %4 = vector.load %arg3[%c0_2, %c0_3] : memref<32x128xbf16, #tpu.memory_space<vmem>>, vector<32x128xbf16>
    %cst = arith.constant dense<0.000000e+00> : vector<16x128xf32>
    %5 = tpu.matmul %3, %4, %cst {dimension_numbers = #tpu.dot_dimension_numbers<[1], [0], [0], [1], [0, 0, 1, 1], [], []>} : vector<16x32xbf16>, vector<32x128xbf16>, vector<16x128xf32> -> vector<16x128xf32>
    %c0_4 = arith.constant 0 : index
    %c0_5 = arith.constant 0 : index
    %6 = vector.load %arg4[%c0_4, %c0_5] : memref<1x128xf32, #tpu.memory_space<vmem>>, vector<1x128xf32>
    %7 = vector.broadcast %6 : vector<1x128xf32> to vector<16x128xf32>
    %8 = arith.addf %5, %7 : vector<16x128xf32>
    %c0_6 = arith.constant 0 : index
    %c0_7 = arith.constant 0 : index
    %9 = vector.load %arg8[%c0_6, %c0_7] : memref<16x1xf32, #tpu.memory_space<vmem>>, vector<16x1xf32>
    %cst_8 = arith.constant dense<0xFF800000> : vector<16xf32>
    %10 = vector.multi_reduction <maximumf>, %8, %cst_8 [1] : vector<16x128xf32> to vector<16xf32>
    %11 = vector.shape_cast %10 : vector<16xf32> to vector<16x1xf32>
    %12 = arith.maximumf %9, %11 : vector<16x1xf32>
    %13 = arith.subf %9, %12 : vector<16x1xf32>
    %14 = math.exp %13 : vector<16x1xf32>
    %c0_9 = arith.constant 0 : index
    %c0_10 = arith.constant 0 : index
    %15 = vector.load %arg9[%c0_9, %c0_10] : memref<16x1xf32, #tpu.memory_space<vmem>>, vector<16x1xf32>
    %16 = arith.mulf %14, %15 : vector<16x1xf32>
    %17 = vector.broadcast %12 : vector<16x1xf32> to vector<16x128xf32>
    %18 = arith.subf %8, %17 : vector<16x128xf32>
    %19 = math.exp %18 : vector<16x128xf32>
    %cst_11 = arith.constant dense<0.000000e+00> : vector<16xf32>
    %20 = vector.multi_reduction <add>, %19, %cst_11 [1] : vector<16x128xf32> to vector<16xf32>
    %21 = vector.shape_cast %20 : vector<16xf32> to vector<16x1xf32>
    %22 = arith.addf %16, %21 : vector<16x1xf32>
    %c0_12 = arith.constant 0 : index
    %c0_13 = arith.constant 0 : index
    %23 = vector.load %arg9[%c0_12, %c0_13] : memref<16x1xf32, #tpu.memory_space<vmem>>, vector<16x1xf32>
    tpu.vector_store %arg9[%c0_12, %c0_13], %22 {strides = array<i32>} : memref<16x1xf32, #tpu.memory_space<vmem>>, vector<16x1xf32>,
    %c0_14 = arith.constant 0 : index
    %c0_15 = arith.constant 0 : index
    %24 = vector.load %arg8[%c0_14, %c0_15] : memref<16x1xf32, #tpu.memory_space<vmem>>, vector<16x1xf32>
    tpu.vector_store %arg8[%c0_14, %c0_15], %12 {strides = array<i32>} : memref<16x1xf32, #tpu.memory_space<vmem>>, vector<16x1xf32>,
    %25 = tpu.iota {dimensions = array<i32: 1>} : vector<16x128xi32>
    %c128_i32 = arith.constant 128 : i32
    %26 = arith.muli %arg1, %c128_i32 : i32
    %27 = vector.broadcast %26 : i32 to vector<16x128xi32>
    %28 = arith.addi %25, %27 : vector<16x128xi32>
    %c0_16 = arith.constant 0 : index
    %c0_17 = arith.constant 0 : index
    %29 = vector.load %arg10[%c0_16, %c0_17] : memref<16x1xf32, #tpu.memory_space<vmem>>, vector<16x1xf32>
    %c0_18 = arith.constant 0 : index
    %c0_19 = arith.constant 0 : index
    %30 = vector.load %arg5[%c0_18, %c0_19] : memref<16x1xi32, #tpu.memory_space<vmem>>, vector<16x1xi32>
    %31 = vector.broadcast %30 : vector<16x1xi32> to vector<16x128xi32>
    %32 = arith.cmpi eq, %28, %31 : vector<16x128xi32>
    %cst_20 = arith.constant 0.000000e+00 : f32
    %33 = vector.broadcast %cst_20 : f32 to vector<16x128xf32>
    %34 = arith.select %32, %8, %33 : vector<16x128xi1>, vector<16x128xf32>
    %cst_21 = arith.constant dense<0.000000e+00> : vector<16xf32>
    %35 = vector.multi_reduction <add>, %34, %cst_21 [1] : vector<16x128xf32> to vector<16xf32>
    %36 = vector.shape_cast %35 : vector<16xf32> to vector<16x1xf32>
    %37 = arith.addf %29, %36 : vector<16x1xf32>
    %c0_22 = arith.constant 0 : index
    %c0_23 = arith.constant 0 : index
    %38 = vector.load %arg10[%c0_22, %c0_23] : memref<16x1xf32, #tpu.memory_space<vmem>>, vector<16x1xf32>
    tpu.vector_store %arg10[%c0_22, %c0_23], %37 {strides = array<i32>} : memref<16x1xf32, #tpu.memory_space<vmem>>, vector<16x1xf32>,
    %c0_i32_24 = arith.constant 0 : i32
    %39 = arith.cmpi eq, %arg1, %c0_i32_24 : i32
    %40 = arith.extui %39 : i1 to i32
    %c0_i32_25 = arith.constant 0 : i32
    %41 = arith.cmpi ne, %40, %c0_i32_25 : i32
    scf.if %41 {
      %c0_26 = arith.constant 0 : index
      %c0_27 = arith.constant 0 : index
      %42 = vector.load %arg8[%c0_26, %c0_27] : memref<16x1xf32, #tpu.memory_space<vmem>>, vector<16x1xf32>
      %c0_28 = arith.constant 0 : index
      %c0_29 = arith.constant 0 : index
      %43 = vector.load %arg9[%c0_28, %c0_29] : memref<16x1xf32, #tpu.memory_space<vmem>>, vector<16x1xf32>
      %44 = math.log %43 : vector<16x1xf32>
      %45 = arith.addf %42, %44 : vector<16x1xf32>
      %c0_30 = arith.constant 0 : index
      %c0_31 = arith.constant 0 : index
      %46 = vector.load %arg6[%c0_30, %c0_31] : memref<16x1xf32, #tpu.memory_space<vmem>>, vector<16x1xf32>
      %c0_32 = arith.constant 0 : index
      %c0_33 = arith.constant 0 : index
      %47 = vector.load %arg10[%c0_32, %c0_33] : memref<16x1xf32, #tpu.memory_space<vmem>>, vector<16x1xf32>
      %48 = arith.subf %45, %47 : vector<16x1xf32>
      %49 = arith.mulf %46, %48 : vector<16x1xf32>
      %50 = vector.shape_cast %49 : vector<16x1xf32> to vector<1x16x1xf32>
      %cst_34 = arith.constant dense<0.000000e+00> : vector<1xf32>
      %51 = vector.multi_reduction <add>, %50, %cst_34 [1, 2] : vector<1x16x1xf32> to vector<1xf32>
      %52 = vector.shape_cast %51 : vector<1xf32> to vector<1x1x1xf32>
      %53 = vector.extract %52[0, 0, 0] : f32 from vector<1x1x1xf32>
      %54 = tpu.iota {dimensions = array<i32: 0>} : vector<8x128xi32>
      %55 = tpu.iota {dimensions = array<i32: 1>} : vector<8x128xi32>
      %c0_i32_35 = arith.constant 0 : i32
      %56 = vector.broadcast %c0_i32_35 : i32 to vector<8x128xi32>
      %57 = arith.cmpi eq, %54, %56 : vector<8x128xi32>
      %c0_i32_36 = arith.constant 0 : i32
      %58 = vector.broadcast %c0_i32_36 : i32 to vector<8x128xi32>
      %59 = arith.cmpi eq, %55, %58 : vector<8x128xi32>
      %60 = arith.andi %57, %59 : vector<8x128xi1>
      %cst_37 = arith.constant 0.000000e+00 : f32
      %61 = vector.broadcast %53 : f32 to vector<8x128xf32>
      %62 = vector.broadcast %cst_37 : f32 to vector<8x128xf32>
      %63 = arith.select %60, %61, %62 : vector<8x128xi1>, vector<8x128xf32>
      %c0_38 = arith.constant 0 : index
      %c0_39 = arith.constant 0 : index
      %64 = vector.load %arg7[%c0_38, %c0_39] : memref<8x128xf32, #tpu.memory_space<vmem>>, vector<8x128xf32>
      tpu.vector_store %arg7[%c0_38, %c0_39], %63 {strides = array<i32>} : memref<8x128xf32, #tpu.memory_space<vmem>>, vector<8x128xf32>,
    } else {
    }
    return
  }
  func.func @transform_0(%arg0: i32, %arg1: i32) -> (i32, i32) {
    %c0_i32 = arith.constant 0 : i32
    %c0_i32_0 = arith.constant 0 : i32
    return %arg0, %c0_i32 : i32, i32
  }
  func.func @transform_1(%arg0: i32, %arg1: i32) -> (i32, i32) {
    %c0_i32 = arith.constant 0 : i32
    %c0_i32_0 = arith.constant 0 : i32
    return %c0_i32, %arg1 : i32, i32
  }
  func.func @transform_2(%arg0: i32, %arg1: i32) -> (i32, i32) {
    %c0_i32 = arith.constant 0 : i32
    %c0_i32_0 = arith.constant 0 : i32
    return %c0_i32, %arg1 : i32, i32
  }
  func.func @transform_3(%arg0: i32, %arg1: i32) -> (i32, i32) {
    %c0_i32 = arith.constant 0 : i32
    %c0_i32_0 = arith.constant 0 : i32
    return %arg0, %c0_i32 : i32, i32
  }
  func.func @transform_4(%arg0: i32, %arg1: i32) -> (i32, i32) {
    %c0_i32 = arith.constant 0 : i32
    %c0_i32_0 = arith.constant 0 : i32
    return %arg0, %c0_i32 : i32, i32
  }
  func.func @transform_5(%arg0: i32, %arg1: i32) -> (i32, i32) {
    %c0_i32 = arith.constant 0 : i32
    %c0_i32_0 = arith.constant 0 : i32
    return %arg0, %c0_i32 : i32, i32
  }
}

</mosaic_0001>

<llo_original>
// kernel: xe_language_model_loss.1
$region0: #{xe_language_model_loss.1}
  #allocation0 [shape = 'u32[]', space=smem, size = 0x4, offset = 0x4, fixed_abs, tag = 'smem constant byte address 0x4 - core index']
  #allocation1 [shape = 'u32[144,128]{1,0:T(1,128)}', space=vmem, size = 0x12000, scoped, tag = 'internal scratch']
  #allocation2 [shape = 'f32[16,1]{1,0:T(8,128)}', space=vmem, size = 0x2000, scoped, tag = 'scratch operand']
  #allocation3 [shape = 'f32[16,1]{1,0:T(8,128)}', space=vmem, size = 0x2000, scoped, tag = 'scratch operand']
  #allocation4 [shape = 'f32[16,1]{1,0:T(8,128)}', space=vmem, size = 0x2000, scoped, tag = 'scratch operand']
  %s0 = inlined_call_operand.vmem [shape: bf16[16,32], index: 0, kind: input, shape index: {}]
  %s1 = inlined_call_operand.vmem [shape: bf16[32,128], index: 1, kind: input, shape index: {}]
  %s2 = inlined_call_operand.vmem [shape: f32[1,128], index: 2, kind: input, shape index: {}]
  %s3 = inlined_call_operand.vmem [shape: s32[16,1], index: 3, kind: input, shape index: {}]
  %s4 = inlined_call_operand.vmem [shape: f32[16,1], index: 4, kind: input, shape index: {}]
  %s5 = inlined_call_operand.vmem [shape: f32[8,128], index: 5, kind: output, shape index: {}]
  %s6 = sld [smem:[#allocation0]]
  $region38: #{xe_language_model_loss.1} parent=0
    _
  %s8 = ssub.s32 1, %s6
  %s9 = scalar_select 0, %s8, %s6
  // Predicated region
  $region2: #{xe_language_model_loss.1} parent=0 // pred_check
    _
  $region3: #{xe_language_model_loss.1} parent=0 // pred_check_branch
    %11 = sbr.rel (0) target = $region5
  $region4: #{xe_language_model_loss.1} parent=0 // pred_region
    _
  $region5: #{xe_language_model_loss.1} parent=0 // pred_fallthru
    _
  // Predicated region
  $region6: #{xe_language_model_loss.1} parent=0 // pred_check
    _
  $region7: #{xe_language_model_loss.1} parent=0 // pred_check_branch
    %13 = sbr.rel (0) target = $region9
  $region8: #{xe_language_model_loss.1} parent=0 // pred_region
    _
  $region9: #{xe_language_model_loss.1} parent=0 // pred_fallthru
    _
  // Predicated region
  $region10: #{xe_language_model_loss.1} parent=0 // pred_check
    _
  $region11: #{xe_language_model_loss.1} parent=0 // pred_check_branch
    %15 = sbr.rel (0) target = $region13
  $region12: #{xe_language_model_loss.1} parent=0 // pred_region
    _
  $region13: #{xe_language_model_loss.1} parent=0 // pred_fallthru
    _
  // Predicated region
  $region14: #{xe_language_model_loss.1} parent=0 // pred_check
    _
  $region15: #{xe_language_model_loss.1} parent=0 // pred_check_branch
    %17 = sbr.rel (0) target = $region17
  $region16: #{xe_language_model_loss.1} parent=0 // pred_region
    _
  $region17: #{xe_language_model_loss.1} parent=0 // pred_fallthru
    _
  // Predicated region
  $region18: #{xe_language_model_loss.1} parent=0 // pred_check
    _
  $region19: #{xe_language_model_loss.1} parent=0 // pred_check_branch
    %19 = sbr.rel (0) target = $region21
  $region20: #{xe_language_model_loss.1} parent=0 // pred_region
    _
  $region21: #{xe_language_model_loss.1} parent=0 // pred_fallthru
    _
  %p21 = scmp.eq.s32.totalorder 0, 0
  // Predicated region
  $region22: #{xe_language_model_loss.1} parent=0 // pred_check
    %p22 = pneg %p21
  $region23: #{xe_language_model_loss.1} parent=0 // pred_check_branch
    %24 = sbr.rel (%p22) target = $region25
  $region24: #{xe_language_model_loss.1} parent=0 // pred_region
    %vm25 = vcmask 7168
    %26 = vst.msk [vmem:[#allocation2] sm:$0xff] %vm25, -inf
    %27 = vst.msk [vmem:[#allocation2 + $0x8] sm:$0xff] %vm25, -inf
    %28 = vst.msk [vmem:[#allocation3] sm:$0xff] %vm25, 0.0
    %29 = vst.msk [vmem:[#allocation3 + $0x8] sm:$0xff] %vm25, 0.0
    %30 = vst.msk [vmem:[#allocation4] sm:$0xff] %vm25, 0.0
    %31 = vst.msk [vmem:[#allocation4 + $0x8] sm:$0xff] %vm25, 0.0
  $region25: #{xe_language_model_loss.1} parent=0 // pred_fallthru
    _
  %v32 = vld [vmem:[%s0] sm:$0xf]
  %v33 = vld [vmem:[%s0 + $0x4] sm:$0xf]
  %v34 = vld [vmem:[%s1] sm:$0xf]
  %v35 = vld [vmem:[%s1 + $0x4] sm:$0xf]
  %v36 = vld [vmem:[%s1 + $0x8] sm:$0xf]
  %v37 = vld [vmem:[%s1 + $0xc] sm:$0xf]
  %v38 = vld [vmem:[%s2] sm:$0x1]
  %v40 = vlaneseq
  %v41 = vshrl.u32 %v40, 7
  %v42 = vsub.s32 0, %v41
  %v43 = vrot.slane %v38, %v42
  %v47 = vunpack.c.l.b16 %v32
  %v48 = vunpack.c.l.b16 %v33
  %v49 = vpack.c.b16 %v48, %v47
  %v54 = vunpack.c.l.b16 %v34
  %v55 = vunpack.c.l.b16 %v35
  %v56 = vunpack.c.l.b16 %v36
  %v57 = vunpack.c.l.b16 %v37
  %v58 = vpack.c.b16 %v55, %v54
  %v59 = vpack.c.b16 %v57, %v56
  %vm62 = vcmask 261120
  %v64 = vsel %vm62, %v49, 0
  %66 = vmatprep.subr.bf16.mxu0 0
  %67 = vmatpush1.bf16.msra.mxu0 0
  %68 = vmatprep.subr.bf16.mxu0 0
  %69 = vmatpush1.bf16.msra.mxu0 0
  %70 = vmatprep.subr.bf16.mxu0 0
  %71 = vmatpush1.bf16.msra.mxu0 0
  %72 = vmatprep.subr.bf16.mxu0 0
  %73 = vmatpush1.bf16.msra.mxu0 0
  %74 = vmatprep.subr.bf16.mxu0 0
  %75 = vmatpush1.bf16.msra.mxu0 0
  %76 = vmatprep.subr.bf16.mxu0 0
  %77 = vmatpush1.bf16.msra.mxu0 0
  %78 = vmatprep.subr.bf16.mxu0 0
  %79 = vmatpush1.bf16.msra.mxu0 %v59
  %80 = vmatprep.subr.bf16.mxu0 0
  %81 = vmatpush1.bf16.msra.mxu0 %v58
  %82 = vmatprep.subr.bf16.mxu0 0
  %83 = vmatpush2.bf16.msra.mxu0 0
  %84 = vmatprep.subr.bf16.mxu0 0
  %85 = vmatpush2.bf16.msra.mxu0 0
  %86 = vmatprep.subr.bf16.mxu0 0
  %87 = vmatpush2.bf16.msra.mxu0 0
  %88 = vmatprep.subr.bf16.mxu0 0
  %89 = vmatpush2.bf16.msra.mxu0 0
  %90 = vmatprep.subr.bf16.mxu0 0
  %91 = vmatpush2.bf16.msra.mxu0 0
  %92 = vmatprep.subr.bf16.mxu0 0
  %93 = vmatpush2.bf16.msra.mxu0 0
  %94 = vmatprep.subr.bf16.mxu0 0
  %95 = vmatpush2.bf16.msra.mxu0 0
  %96 = vmatprep.subr.bf16.mxu0 0
  %97 = vmatpush2.bf16.msra.mxu0 0
  %98 = vmatprep.mubr.bf16.mxu0 0
  %99 = vmatmul.mubr.bf16.gmra.mxu0 %v64
  %v100 = vpop.f32.mrf.mxu0
  %v101 = vadd.f32 %v43, %v100
  %v102 = vpop.f32.mrf.mxu0
  %v103 = vpop.f32.mrf.mxu0
  %v104 = vadd.f32 %v43, %v103
  %v105 = vpop.f32.mrf.mxu0
  %106 = vdwg.mxu0
  %v107 = vld [vmem:[#allocation2] sm:$0xff]
  %v108 = vld [vmem:[#allocation2 + $0x8] sm:$0xff]
  %109 = vmax.xlane.f32.xlu0 %v101
  %v110 = vpop.xlane.xlu0 %109
  %111 = vmax.xlane.f32.xlu0 %v104
  %v112 = vpop.xlane.xlu0 %111
  %v113 = vmax.f32 %v107, %v110
  %v114 = vmax.f32 %v108, %v112
  %v115 = vsub.f32 %v107, %v113
  %v116 = vsub.f32 %v108, %v114
  %v117 = vmul.f32 %v115, 1.442695
  %v118 = vpow.pop %v117
  %v119 = vmul.f32 %v116, 1.442695
  %v120 = vpow.pop %v119
  %v121 = vld [vmem:[#allocation3] sm:$0xff]
  %v122 = vld [vmem:[#allocation3 + $0x8] sm:$0xff]
  %v123 = vmul.f32 %v118, %v121
  %v124 = vmul.f32 %v120, %v122
  %126 = vset.pattern.permute.xlu0 0
  %127 = vperm.xlu0 %126, %v113
  %v128 = vpop.permute.xlu0 %127
  %131 = vset.pattern.permute.xlu0 0
  %132 = vperm.xlu0 %131, %v114
  %v133 = vpop.permute.xlu0 %132
  %v135 = vsub.f32 %v101, %v128
  %v136 = vsub.f32 %v104, %v133
  %v137 = vmul.f32 %v135, 1.442695
  %v138 = vpow.pop %v137
  %v139 = vmul.f32 %v136, 1.442695
  %v140 = vpow.pop %v139
  %141 = vadd.xlane.f32.xlu0 %v138
  %v142 = vpop.xlane.xlu0 %141
  %143 = vadd.xlane.f32.xlu0 %v140
  %v144 = vpop.xlane.xlu0 %143
  %v145 = vadd.f32 %v123, %v142
  %v146 = vadd.f32 %v124, %v144
  %vm147 = vcmask 7168
  %148 = vst.msk [vmem:[#allocation3] sm:$0xff] %vm147, %v145
  %149 = vst.msk [vmem:[#allocation3 + $0x8] sm:$0xff] %vm147, %v146
  %150 = vst.msk [vmem:[#allocation2] sm:$0xff] %vm147, %v113
  %151 = vst.msk [vmem:[#allocation2 + $0x8] sm:$0xff] %vm147, %v114
  %v152 = vlaneseq
  %v153 = vand.u32 %v152, 127
  %s154 = smul.u32 0, 128
  %v155 = vstv %s154
  %v156 = vadd.s32 %v153, %v155
  %v157 = vld [vmem:[#allocation4] sm:$0xff]
  %v158 = vld [vmem:[#allocation4 + $0x8] sm:$0xff]
  %v159 = vld [vmem:[%s3] sm:$0xff]
  %v160 = vld [vmem:[%s3 + $0x8] sm:$0xff]
  %161 = vset.pattern.permute.xlu0 0
  %162 = vperm.xlu0 %161, %v159
  %v163 = vpop.permute.xlu0 %162
  %164 = vset.pattern.permute.xlu0 0
  %165 = vperm.xlu0 %164, %v160
  %v166 = vpop.permute.xlu0 %165
  %vm167 = vcmp.eq.s32.totalorder %v156, %v163
  %vm168 = vcmp.eq.s32.totalorder %v156, %v166
  %v169 = vsel %vm167, %v101, 0.0
  %v170 = vsel %vm168, %v104, 0.0
  %171 = vadd.xlane.f32.xlu0 %v169
  %v172 = vpop.xlane.xlu0 %171
  %173 = vadd.xlane.f32.xlu0 %v170
  %v174 = vpop.xlane.xlu0 %173
  %v175 = vadd.f32 %v157, %v172
  %v176 = vadd.f32 %v158, %v174
  %177 = vst.msk [vmem:[#allocation4] sm:$0xff] %vm147, %v175
  %178 = vst.msk [vmem:[#allocation4 + $0x8] sm:$0xff] %vm147, %v176
  // Predicated region
  $region26: #{xe_language_model_loss.1} parent=0 // pred_check
    %p179 = pneg %p21
  $region27: #{xe_language_model_loss.1} parent=0 // pred_check_branch
    %181 = sbr.rel (%p179) target = $region29
  $region28: #{xe_language_model_loss.1} parent=0 // pred_region
    %v182 = vld [vmem:[#allocation2] sm:$0xff]
    %v183 = vld [vmem:[#allocation2 + $0x8] sm:$0xff]
    %v184 = vld [vmem:[#allocation3] sm:$0xff]
    %v185 = vld [vmem:[#allocation3 + $0x8] sm:$0xff]
    %v186 = vlog2.pop %v184
    %v187 = vmul.f32 %v186, 0.6931472
    %v188 = vlog2.pop %v185
    %v189 = vmul.f32 %v188, 0.6931472
    %v190 = vadd.f32 %v182, %v187
    %v191 = vadd.f32 %v183, %v189
    %v192 = vld [vmem:[%s4] sm:$0xff]
    %v193 = vld [vmem:[%s4 + $0x8] sm:$0xff]
    %v194 = vld [vmem:[#allocation4] sm:$0xff]
    %v195 = vld [vmem:[#allocation4 + $0x8] sm:$0xff]
    %v196 = vsub.f32 %v190, %v194
    %v197 = vsub.f32 %v191, %v195
    %v198 = vmul.f32 %v192, %v196
    %v199 = vmul.f32 %v193, %v197
    %v200 = vsel %vm147, %v198, 0.0
    %v201 = vsel %vm147, %v199, 0.0
    %v202 = vadd.f32 %v200, %v201
    %203 = vadd.xlane.f32.xlu0 %v202
    %v204 = vpop.xlane.xlu0 %203
    %v205 = vrot.slane %v204, 4
    %v206 = vadd.f32 %v204, %v205
    %v207 = vrot.slane %v206, 2
    %v208 = vadd.f32 %v206, %v207
    %v209 = vrot.slane %v208, 1
    %v210 = vadd.f32 %v208, %v209
    %s211 = vtos %v210
    %v212 = vlaneseq
    %v213 = vshrl.u32 %v212, 7
    %vm214 = vcmp.eq.s32.totalorder %v213, 0
    %vm215 = vcmp.eq.s32.totalorder %v153, 0
    %vm216 = vmand %vm214, %vm215
    %v217 = vstv %s211
    %v218 = vsel %vm216, %v217, 0.0
    %219 = vst [vmem:[%s5] sm:$0xff] %v218
  $region29: #{xe_language_model_loss.1} parent=0 // pred_fallthru
    _
  // Predicated region
  $region30: #{xe_language_model_loss.1} parent=0 // pred_check
    _
  $region31: #{xe_language_model_loss.1} parent=0 // pred_check_branch
    %221 = sbr.rel (0) target = $region33
  $region32: #{xe_language_model_loss.1} parent=0 // pred_region
    _
  $region33: #{xe_language_model_loss.1} parent=0 // pred_fallthru
    _
  // Predicated region
  $region34: #{xe_language_model_loss.1} parent=0 // pred_check
    _
  $region35: #{xe_language_model_loss.1} parent=0 // pred_check_branch
    %223 = sbr.rel (0) target = $region37
  $region36: #{xe_language_model_loss.1} parent=0 // pred_region
    _
  $region37: #{xe_language_model_loss.1} parent=0 // pred_fallthru
    _

</llo_original>
